<compile_context>
chip_gen: v5e
topology: v5e:2x2
jax: 0.10.0
libtpu: 0.0.40
codegen_flags: <defaults>
</compile_context>

<pallas_src>
import jax
import jax.numpy as jnp
from jax.experimental import pallas as pl
from jax.experimental.pallas import tpu as pltpu


def _eltwise_broadcast_kernel(ab_ref, x_ref, o_ref):
    # ab_ref: (TM, 2) f32 fused per-row scalars; x_ref/o_ref: (TM, TN) in x dtype.
    a = ab_ref[:, 0:1]                               # (TM, 1)
    b = ab_ref[:, 1:2]                               # (TM, 1)
    x = x_ref[...].astype(jnp.float32)               # no-op for f32; upcast for bf16
    # Single fused multiply-add per vreg -- keep the body minimal (mem-bound).
    o_ref[...] = (a + b * x).astype(o_ref.dtype)


def _pick_tiles(nc, hw):
    # 256 x 2048 f32 tile = 2 MiB; with x-in + out double-buffered ~8 MiB of
    # pipelined VMEM -- comfortably under the 64 MiB/TC budget on v7x and with
    # large headroom on v5e/v6e (128 MiB).  Lane width 2048 keeps stores
    # unmasked (big multiple of 128) -- the main perf lever for this op.
    TM_MAX, TN_MAX = 256, 2048
    tm = nc if nc <= TM_MAX else TM_MAX              # TM_MAX is a multiple of 8
    tn = hw if hw <= TN_MAX else TN_MAX              # TN_MAX is a multiple of 128
    # Block dims must be (8, 128)-aligned or equal to the full array dims.
    if tn != hw and tn % 128 != 0:
        tn = (tn // 128) * 128 or hw
    if tm != nc and tm % 8 != 0:
        tm = (tm // 8) * 8 or nc
    return tm, tn


def eltwise_broadcast(x, a, b):
    """Computes a[:, :, None, None] + b[:, :, None, None] * x  (NCHW input)."""
    N, C, H, W = x.shape
    assert a.shape == (1, C) and b.shape == (1, C)
    nc, hw = N * C, H * W

    # (N*C, H*W): last dim lane-dense, one (a, b) scalar pair per row.
    x2 = x.reshape(nc, hw)
    ab = jnp.stack(
        [
            jnp.broadcast_to(a.reshape(1, C), (N, C)).reshape(nc),
            jnp.broadcast_to(b.reshape(1, C), (N, C)).reshape(nc),
        ],
        axis=-1,
    ).astype(jnp.float32)

    tm, tn = _pick_tiles(nc, hw)
    grid = (pl.cdiv(nc, tm), pl.cdiv(hw, tn))

    itemsize = jnp.dtype(x.dtype).itemsize
    tile_bytes = tm * tn * itemsize
    # x-in + out tiles double-buffered, plus ab tiles and headroom; cap at
    # 48 MiB so the same tiling compiles on v7x (64 MiB VMEM per TC).
    vmem_limit = int(min(max(4 * tile_bytes + (4 << 20), 16 << 20), 48 << 20))

    out2 = pl.pallas_call(
        _eltwise_broadcast_kernel,
        out_shape=jax.ShapeDtypeStruct((nc, hw), x.dtype),
        grid=grid,
        in_specs=[
            pl.BlockSpec((tm, 2), lambda i, j: (i, 0)),     # fused (a, b) scalars
            pl.BlockSpec((tm, tn), lambda i, j: (i, j)),    # x tile
        ],
        out_specs=pl.BlockSpec((tm, tn), lambda i, j: (i, j)),
        compiler_params=pltpu.CompilerParams(
            dimension_semantics=("parallel", "parallel"),
            vmem_limit_bytes=vmem_limit,
        ),
        cost_estimate=pl.CostEstimate(
            flops=2 * nc * hw,
            transcendentals=0,
            bytes_accessed=2 * nc * hw * itemsize + nc * 2 * 4,
        ),
    )(ab, x2)

    return out2.reshape(N, C, H, W)


if __name__ == "__main__":
    # Parameters exactly as in the PyTorch module __init__ (C = 2 channels).
    a = jnp.array([[0.1, -0.2]], dtype=jnp.float32)   # (1, 2)
    b = jnp.array([[-0.9, 0.8]], dtype=jnp.float32)   # (1, 2)

    # Case 1: small shape (single tile): N=2, C=2, H=W=16.
    x1 = jax.random.normal(jax.random.PRNGKey(0), (2, 2, 16, 16), dtype=jnp.float32)
    out1 = jax.block_until_ready(eltwise_broadcast(x1, a, b))
    ref1 = a[:, :, None, None] + b[:, :, None, None] * x1
    assert out1.shape == ref1.shape and out1.dtype == x1.dtype
    assert jnp.allclose(out1, ref1, atol=1e-6), "mismatch vs reference (case 1)"

    # Case 2: larger spatial dims so the grid actually tiles over hw.
    x2 = jax.random.normal(jax.random.PRNGKey(1), (2, 2, 64, 64), dtype=jnp.float32)
    out2 = jax.block_until_ready(eltwise_broadcast(x2, a, b))
    ref2 = a[:, :, None, None] + b[:, :, None, None] * x2
    assert jnp.allclose(out2, ref2, atol=1e-6), "mismatch vs reference (case 2)"

    print("KERNEL_OK")
</pallas_src>

<mosaic_0001>
module attributes {stable_mosaic.version = 11 : i64} {
  func.func @_eltwise_broadcast_kernel(%arg0: i32, %arg1: i32, %arg2: memref<4x2xf32, #tpu.memory_space<vmem>>, %arg3: memref<4x256xf32, #tpu.memory_space<vmem>>, %arg4: memref<4x256xf32, #tpu.memory_space<vmem>>) attributes {dimension_semantics = [#tpu.dimension_semantics<parallel>, #tpu.dimension_semantics<parallel>], iteration_bounds = array<i64: 1, 1>, scalar_prefetch = 0 : i64, scratch_operands = 0 : i64, tpu.core_type = #tpu.core_type<tc>, window_params = [{transform_indices = @transform_0, window_bounds = array<i64: 4, 2>}, {transform_indices = @transform_1, window_bounds = array<i64: 4, 256>}, {transform_indices = @transform_2, window_bounds = array<i64: 4, 256>}]} {
    %c0 = arith.constant 0 : index
    %c0_0 = arith.constant 0 : index
    %0 = vector.load %arg2[%c0, %c0_0] : memref<4x2xf32, #tpu.memory_space<vmem>>, vector<4x1xf32>
    %c0_1 = arith.constant 0 : index
    %c1 = arith.constant 1 : index
    %1 = vector.load %arg2[%c0_1, %c1] : memref<4x2xf32, #tpu.memory_space<vmem>>, vector<4x1xf32>
    %c0_2 = arith.constant 0 : index
    %c0_3 = arith.constant 0 : index
    %2 = vector.load %arg3[%c0_2, %c0_3] : memref<4x256xf32, #tpu.memory_space<vmem>>, vector<4x256xf32>
    %3 = vector.broadcast %1 : vector<4x1xf32> to vector<4x256xf32>
    %4 = arith.mulf %3, %2 : vector<4x256xf32>
    %5 = vector.broadcast %0 : vector<4x1xf32> to vector<4x256xf32>
    %6 = arith.addf %5, %4 : vector<4x256xf32>
    %c0_4 = arith.constant 0 : index
    %c0_5 = arith.constant 0 : index
    %7 = vector.load %arg4[%c0_4, %c0_5] : memref<4x256xf32, #tpu.memory_space<vmem>>, vector<4x256xf32>
    tpu.vector_store %arg4[%c0_4, %c0_5], %6 {strides = array<i32>} : memref<4x256xf32, #tpu.memory_space<vmem>>, vector<4x256xf32>,
    return
  }
  func.func @transform_0(%arg0: i32, %arg1: i32) -> (i32, i32) {
    %c0_i32 = arith.constant 0 : i32
    %c0_i32_0 = arith.constant 0 : i32
    return %arg0, %c0_i32 : i32, i32
  }
  func.func @transform_1(%arg0: i32, %arg1: i32) -> (i32, i32) {
    %c0_i32 = arith.constant 0 : i32
    return %arg0, %arg1 : i32, i32
  }
  func.func @transform_2(%arg0: i32, %arg1: i32) -> (i32, i32) {
    %c0_i32 = arith.constant 0 : i32
    return %arg0, %arg1 : i32, i32
  }
}

</mosaic_0001>

<llo_original>
// kernel: tpu_custom_call.1
$region0: #{tpu_custom_call.1}
  #allocation0 [shape = 'u32[]', space=smem, size = 0x4, offset = 0x4, fixed_abs, tag = 'smem constant byte address 0x4 - core index']
  #allocation1 [shape = 'u32[72,128]{1,0:T(1,128)}', space=vmem, size = 0x9000, scoped, tag = 'internal scratch']
  %s0 = inlined_call_operand.vmem [shape: f32[4,2], index: 0, kind: input, shape index: {}]
  %s1 = inlined_call_operand.hbm [shape: f32[4,256], index: 1, kind: input, shape index: {}]
  %s2 = inlined_call_operand.hbm [shape: f32[4,256], index: 2, kind: output, shape index: {}]
  %s3 = sld [smem:[#allocation0]]
  $region22: #{tpu_custom_call.1} parent=0
    _
  %s5 = ssub.s32 1, %s3
  %s6 = scalar_select 0, %s5, %s3
  $region1: #{tpu_custom_call.1} parent=0
    #allocation2 [shape = 'u8[4096]{0}', space=vmem, size = 0x1000, scoped, tag = 'input window, operand 1, single buffered']
    #allocation3 [shape = 's32[1]{0}', space=sflag, size = 0x4, scoped, tag = 'scoped memory for tpu_custom_call.1']
    #allocation4 [shape = 's32[1]{0}', space=sflag, size = 0x4, scoped, tag = 'scoped memory for tpu_custom_call.1']
    #allocation5 [shape = 'u8[4096]{0}', space=vmem, size = 0x1000, scoped, tag = 'output window, operand 0, single buffered']
    %7 = vsyncpa [#allocation3], 0
    %8 = vsyncpa [#allocation4], 0
    // Predicated region
    $region2: #{tpu_custom_call.1} parent=1 // pred_check
      _
    $region3: #{tpu_custom_call.1} parent=1 // pred_check_branch
      %10 = sbr.rel (0) target = $region5
    $region4: #{tpu_custom_call.1} parent=1 // pred_region
      _
    $region5: #{tpu_custom_call.1} parent=1 // pred_fallthru
      _
    // Predicated region
    $region6: #{tpu_custom_call.1} parent=1 // pred_check
      _
    $region7: #{tpu_custom_call.1} parent=1 // pred_check_branch
      %12 = sbr.rel (0) target = $region9
    $region8: #{tpu_custom_call.1} parent=1 // pred_region
      %14 = vsyncadd [#allocation3], 0
      %s16 = sshll.u32 %s1, 4
      %s17 = int_to_ptr.hbm [resolvable:$true] %s16
      %s18 = sshll.u32 [#allocation2], 4
      %s19 = int_to_ptr.vmem [resolvable:$true] %s18
      %21 = dma.hbm_to_vmem [thread:$0]  %s17, 128, %s19, [#allocation3]
    $region9: #{tpu_custom_call.1} parent=1 // pred_fallthru
      _
    // Predicated region
    $region10: #{tpu_custom_call.1} parent=1 // pred_check
      _
    $region11: #{tpu_custom_call.1} parent=1 // pred_check_branch
      %23 = sbr.rel (0) target = $region13
    $region12: #{tpu_custom_call.1} parent=1 // pred_region
      %25 = dma.done [#allocation3], 128
    $region13: #{tpu_custom_call.1} parent=1 // pred_fallthru
      _
    %v26 = vld [vmem:[%s0] sm:$0xf]
    %v27 = vld [vmem:[#allocation2] sm:$0xff]
    %29 = vset.pattern.permute.xlu0 1
    %30 = vperm.xlu0 %29, %v26
    %v31 = vpop.permute.xlu0 %30
    %34 = vst [vmem:[#allocation1] ss:$2 sm:$0xff] %v27
    %v35 = vld.sshfl [vmem:[#allocation1] sm:$0xff pattern:$0x75316420]
    %v36 = vld.sshfl [vmem:[#allocation1 + $0x8] sm:$0xff pattern:$0x75316420]
    %v39 = vmul.f32 %v31, %v35
    %v40 = vmul.f32 %v31, %v36
    %41 = vset.pattern.permute.xlu0 0
    %42 = vperm.xlu0 %41, %v26
    %v43 = vpop.permute.xlu0 %42
    %v45 = vadd.f32 %v43, %v39
    %v46 = vadd.f32 %v43, %v40
    %v49 = vrot.slane %v46, 4
    %vm50 = vcmask 1043456
    %v51 = vsel %vm50, %v45, %v49
    %53 = vst [vmem:[#allocation5] sm:$0xff] %v51
    // Predicated region
    $region14: #{tpu_custom_call.1} parent=1 // pred_check
      _
    $region15: #{tpu_custom_call.1} parent=1 // pred_check_branch
      %55 = sbr.rel (0) target = $region17
    $region16: #{tpu_custom_call.1} parent=1 // pred_region
      %57 = vsyncadd [#allocation4], 0
      %s59 = sshll.u32 [#allocation5], 4
      %s60 = int_to_ptr.vmem [resolvable:$true] %s59
      %s61 = sshll.u32 %s2, 4
      %s62 = int_to_ptr.hbm [resolvable:$true] %s61
      %64 = dma.vmem_to_hbm [thread:$0]  %s60, 128, %s62, [#allocation4]
    $region17: #{tpu_custom_call.1} parent=1 // pred_fallthru
      _
    // Predicated region
    $region18: #{tpu_custom_call.1} parent=1 // pred_check
      _
    $region19: #{tpu_custom_call.1} parent=1 // pred_check_branch
      %66 = sbr.rel (0) target = $region21
    $region20: #{tpu_custom_call.1} parent=1 // pred_region
      %68 = dma.done [#allocation4], 128
    $region21: #{tpu_custom_call.1} parent=1 // pred_fallthru
      _
    %69 = vsyncpa [#allocation3], 1
    %70 = vsyncpa [#allocation4], 1

</llo_original>
